<compile_context>
chip_gen: v6e
topology: v6e:2x2x1
jax: 0.10.0
libtpu: 0.0.40
codegen_flags: <defaults>
</compile_context>

<pallas_src>
import functools

import numpy as np
import jax
import jax.numpy as jnp
from jax import lax
from jax.experimental import pallas as pl
from jax.experimental.pallas import tpu as pltpu

BN_EPS = 1e-5


# ----------------------------------------------------------------------------
# Kernel
# ----------------------------------------------------------------------------
def _double_conv_kernel(x_ref, w1_ref, b1_ref, g1_ref, be1_ref,
                        w2_ref, b2_ref, g2_ref, be2_ref, o_ref,
                        *, N, H, W, Cin, Cout, batch_norm):
    M = N * H
    K1 = W * Cin           # per-tap contraction of conv1
    L = W * Cout           # conv output lanes == per-tap contraction of conv2
    inv_cnt = 1.0 / float(N * H * W)

    def row_taps(a3d):
        # a3d: (N, H, C) value.  Returns the three dy taps (rows h-1, h, h+1),
        # zero outside the image -- 3x3 "SAME" row padding without any scratch
        # buffer or HBM round trip.
        zero_row = jnp.zeros((N, 1, a3d.shape[-1]), a3d.dtype)
        prev = jnp.concatenate([zero_row, a3d[:, :H - 1, :]], axis=1)
        nxt = jnp.concatenate([a3d[:, 1:, :], zero_row], axis=1)
        return (prev, a3d, nxt)

    def conv_banded(a3d, w_ref, k):
        # Three per-dy matmuls (bf16 operands, f32 accumulation).  The x-wise
        # zero padding is folded into the banded weight, so each tap is a
        # single (M, k) @ (k, L) dot -- no im2col concat, no padded K.
        acc = None
        for dy, tap in enumerate(row_taps(a3d)):
            p = jnp.dot(tap.reshape(M, k), w_ref[pl.ds(dy * k, k), :],
                        preferred_element_type=jnp.float32)
            acc = p if acc is None else acc + p
        return acc                                             # (M, L) f32

    def channel_allreduce(v):
        # v: (1, L) f32, lane index = w*Cout + c.  Cyclic roll-butterfly over
        # the W lane groups (XLU rolls + VPU adds); every lane ends up holding
        # its channel's total, already broadcast for the later FMA.  Exact
        # because L is a multiple of 128 (no padded lanes) and W is a power of
        # two (both asserted in the wrapper).
        shift = Cout
        while shift < L:
            v = v + pltpu.roll(v, shift, axis=1)
            shift *= 2
        return v

    def bn_relu(h, gamma, beta):
        # Training-mode BatchNorm2d (biased batch stats over N,H,W), two-pass
        # for numerical safety, folded into a single per-lane FMA, then ReLU.
        mean = channel_allreduce(jnp.sum(h, axis=0, keepdims=True)) * inv_cnt
        centered = h - mean
        var = channel_allreduce(
            jnp.sum(centered * centered, axis=0, keepdims=True)) * inv_cnt
        scale = gamma * lax.rsqrt(var + BN_EPS)
        shift = beta - mean * scale
        return jnp.maximum(h * scale + shift, 0.0)

    def bias_relu(h, bias):
        return jnp.maximum(h + bias, 0.0)

    # ---- conv1 -> [BN] -> ReLU
    h1 = conv_banded(x_ref[...], w1_ref, K1)
    h1 = bn_relu(h1, g1_ref[...], be1_ref[...]) if batch_norm \
        else bias_relu(h1, b1_ref[...])

    # ---- conv2 -> [BN] -> ReLU (intermediate kept in registers, bf16 operands)
    h2 = conv_banded(h1.astype(jnp.bfloat16).reshape(N, H, L), w2_ref, L)
    h2 = bn_relu(h2, g2_ref[...], be2_ref[...]) if batch_norm \
        else bias_relu(h2, b2_ref[...])

    o_ref[...] = h2.reshape(N, H, L).astype(o_ref.dtype)   # lane-dense store


# ----------------------------------------------------------------------------
# Parameter preparation (hoisted: run once per weight update, not per call)
# ----------------------------------------------------------------------------
def _banded_weight(w, width):
    """Fold 3x3 HWIO conv weights into per-dy banded matrices so a conv over a
    lane-dense (..., W*Cin) activation layout becomes one matmul per dy tap.

    Returns B of shape (3, width*Cin, width*Cout) with
      B[dy, xi*Cin + ci, xo*Cout + co] = w[dy, xi - xo + 1, ci, co]  if |xi-xo|<=1
    Out-of-range dx taps are simply absent, which implements the zero x-padding.
    """
    kh, kw, cin, cout = w.shape
    sel = np.zeros((kw, width, width), np.float32)            # sel[dx, xi, xo]
    for dx in range(kw):
        for xo in range(width):
            xi = xo + dx - kw // 2
            if 0 <= xi < width:
                sel[dx, xi, xo] = 1.0
    b = jnp.einsum("xio,dxcf->dicof", jnp.asarray(sel), w.astype(jnp.float32))
    return b.reshape(kh, width * cin, width * cout)


def prepare_double_conv_params(params, W):
    """Banded bf16 weights + per-channel vectors tiled across the W lane
    groups.  Call once per weight update; reuse across forward calls."""
    w1, b1, g1, be1, w2, b2, g2, be2 = params
    Cin, Cout = w1.shape[2], w1.shape[3]
    tile = lambda v: jnp.tile(v.reshape(1, Cout), (1, W)).astype(jnp.float32)
    return dict(
        W=W, Cin=Cin, Cout=Cout,
        w1b=_banded_weight(w1, W).reshape(3 * W * Cin, W * Cout).astype(jnp.bfloat16),
        w2b=_banded_weight(w2, W).reshape(3 * W * Cout, W * Cout).astype(jnp.bfloat16),
        b1=tile(b1), g1=tile(g1), be1=tile(be1),
        b2=tile(b2), g2=tile(g2), be2=tile(be2))


# ----------------------------------------------------------------------------
# Callers
# ----------------------------------------------------------------------------
def double_conv_lane_dense(x_lane, prepped, *, batch_norm=True,
                           out_dtype=jnp.float32):
    """x_lane: (N, H, W*Cin) activations in lane-dense layout.
    Returns (N, H, W*Cout) in `out_dtype` (use bf16 when chaining blocks)."""
    N, H, KW = x_lane.shape
    W, Cin, Cout = prepped["W"], prepped["Cin"], prepped["Cout"]
    K1, L = W * Cin, W * Cout
    assert KW == K1
    if batch_norm:
        # Requirements of the in-kernel roll-butterfly channel reduction.
        assert (W & (W - 1)) == 0, "BN lane reduction needs W to be a power of 2"
        assert L % 128 == 0, "BN lane reduction needs W*Cout to be a multiple of 128"

    full = lambda shape: pl.BlockSpec(shape, lambda i: (0,) * len(shape))
    operands = [
        (x_lane.astype(jnp.bfloat16), (N, H, K1)),
        (prepped["w1b"], (3 * K1, L)),
        (prepped["b1"], (1, L)), (prepped["g1"], (1, L)), (prepped["be1"], (1, L)),
        (prepped["w2b"], (3 * L, L)),
        (prepped["b2"], (1, L)), (prepped["g2"], (1, L)), (prepped["be2"], (1, L)),
    ]
    out_shape = jax.ShapeDtypeStruct((N, H, L), out_dtype)

    # VMEM limit derived from the actual block footprint (BlockSpec
    # double-buffers each operand), with generous headroom; v5e's default
    # scoped limit is only 16 MiB.
    block_bytes = sum(int(np.prod(s)) * np.dtype(a.dtype).itemsize
                      for a, s in operands)
    block_bytes += int(np.prod(out_shape.shape)) * np.dtype(out_dtype).itemsize
    vmem_limit = int(max(4 << 20, 4 * block_bytes))

    kernel = functools.partial(_double_conv_kernel, N=N, H=H, W=W, Cin=Cin,
                               Cout=Cout, batch_norm=batch_norm)

    # TODO(synk): grid=(1,) because training-mode BN statistics span all of
    # N*H*W at this demo size; see header TODO for the row-block tiled,
    # two-pass-BN version needed at real UNet sizes / for v7x's two cores.
    return pl.pallas_call(
        kernel,
        out_shape=out_shape,
        grid=(1,),
        in_specs=[full(s) for _, s in operands],
        out_specs=full((N, H, L)),
        compiler_params=pltpu.CompilerParams(
            dimension_semantics=("arbitrary",),
            vmem_limit_bytes=vmem_limit),
    )(*[a for a, _ in operands])


def double_conv_pallas(x_nchw, prepped, batch_norm=True):
    """NCHW in / NCHW f32 out, matching the PyTorch module.  For stacked UNet
    blocks prefer double_conv_lane_dense to skip the layout transposes."""
    N, Cin, H, W = x_nchw.shape
    assert Cin == prepped["Cin"] and W == prepped["W"]
    x_lane = jnp.transpose(x_nchw, (0, 2, 3, 1)).reshape(N, H, W * Cin)
    out = double_conv_lane_dense(x_lane, prepped, batch_norm=batch_norm,
                                 out_dtype=jnp.float32)
    Cout = prepped["Cout"]
    return jnp.transpose(out.reshape(N, H, W, Cout), (0, 3, 1, 2))


# ----------------------------------------------------------------------------
# Pure-JAX reference (f32), matching the PyTorch forward (training-mode BN)
# ----------------------------------------------------------------------------
def double_conv_reference(x_nchw, params, batch_norm=True):
    w1, b1, g1, be1, w2, b2, g2, be2 = params
    x = jnp.transpose(x_nchw, (0, 2, 3, 1))

    def conv(x, w, b):
        y = lax.conv_general_dilated(x, w, (1, 1), "SAME",
                                     dimension_numbers=("NHWC", "HWIO", "NHWC"))
        return y + b.reshape(1, 1, 1, -1)

    def bn(x, g, be):
        mean = jnp.mean(x, axis=(0, 1, 2), keepdims=True)
        var = jnp.mean((x - mean) ** 2, axis=(0, 1, 2), keepdims=True)
        return g.reshape(1, 1, 1, -1) * (x - mean) * lax.rsqrt(var + BN_EPS) \
            + be.reshape(1, 1, 1, -1)

    h = conv(x, w1, b1)
    if batch_norm:
        h = bn(h, g1, be1)
    h = jnp.maximum(h, 0.0)
    h = conv(h, w2, b2)
    if batch_norm:
        h = bn(h, g2, be2)
    h = jnp.maximum(h, 0.0)
    return jnp.transpose(h, (0, 3, 1, 2))


def init_params(key, in_size, out_size):
    ks = jax.random.split(key, 8)
    w1 = jax.random.normal(ks[0], (3, 3, in_size, out_size), jnp.float32) * 0.1
    b1 = jax.random.normal(ks[1], (1, out_size), jnp.float32) * 0.05
    g1 = 1.0 + 0.1 * jax.random.normal(ks[2], (1, out_size), jnp.float32)
    be1 = 0.05 * jax.random.normal(ks[3], (1, out_size), jnp.float32)
    w2 = jax.random.normal(ks[4], (3, 3, out_size, out_size), jnp.float32) * 0.1
    b2 = jax.random.normal(ks[5], (1, out_size), jnp.float32) * 0.05
    g2 = 1.0 + 0.1 * jax.random.normal(ks[6], (1, out_size), jnp.float32)
    be2 = 0.05 * jax.random.normal(ks[7], (1, out_size), jnp.float32)
    return (w1, b1, g1, be1, w2, b2, g2, be2)


if __name__ == "__main__":
    key = jax.random.PRNGKey(0)
    k_x, k_p = jax.random.split(key)

    N, Cin, Cout, H, W = 2, 4, 8, 16, 16     # DoubleConv(4, 8, batch_norm=True)
    x = jax.random.normal(k_x, (N, Cin, H, W), jnp.float32)
    params = init_params(k_p, Cin, Cout)

    # Hoisted weight preparation: done once, reused across forward calls.
    prepped = prepare_double_conv_params(params, W)

    for bn in (True, False):
        out = jax.block_until_ready(double_conv_pallas(x, prepped, batch_norm=bn))
        ref = double_conv_reference(x, params, batch_norm=bn)
        assert out.shape == (N, Cout, H, W)
        # bf16 MXU operands + bf16 intermediate vs. a pure-f32 reference:
        # intentional precision tradeoff, hence the 5e-2 envelope.
        assert jnp.allclose(out, ref, rtol=5e-2, atol=5e-2), (
            f"batch_norm={bn}: max abs err {jnp.max(jnp.abs(out - ref))}")

    print("KERNEL_OK")
</pallas_src>

<mosaic_0001>
module attributes {stable_mosaic.version = 11 : i64} {
  func.func @_double_conv_kernel(%arg0: i32, %arg1: memref<2x16x64xbf16, #tpu.memory_space<vmem>>, %arg2: memref<192x128xbf16, #tpu.memory_space<vmem>>, %arg3: memref<1x128xf32, #tpu.memory_space<vmem>>, %arg4: memref<1x128xf32, #tpu.memory_space<vmem>>, %arg5: memref<1x128xf32, #tpu.memory_space<vmem>>, %arg6: memref<384x128xbf16, #tpu.memory_space<vmem>>, %arg7: memref<1x128xf32, #tpu.memory_space<vmem>>, %arg8: memref<1x128xf32, #tpu.memory_space<vmem>>, %arg9: memref<1x128xf32, #tpu.memory_space<vmem>>, %arg10: memref<2x16x128xf32, #tpu.memory_space<vmem>>) attributes {dimension_semantics = [#tpu.dimension_semantics<arbitrary>], iteration_bounds = array<i64: 1>, scalar_prefetch = 0 : i64, scratch_operands = 0 : i64, tpu.core_type = #tpu.core_type<tc>, window_params = [{pipeline_mode = #tpu.pipeline_mode<synchronous>, transform_indices = @transform_0, window_bounds = array<i64: 2, 16, 64>}, {pipeline_mode = #tpu.pipeline_mode<synchronous>, transform_indices = @transform_1, window_bounds = array<i64: 192, 128>}, {pipeline_mode = #tpu.pipeline_mode<synchronous>, transform_indices = @transform_2, window_bounds = array<i64: 1, 128>}, {pipeline_mode = #tpu.pipeline_mode<synchronous>, transform_indices = @transform_3, window_bounds = array<i64: 1, 128>}, {pipeline_mode = #tpu.pipeline_mode<synchronous>, transform_indices = @transform_4, window_bounds = array<i64: 1, 128>}, {pipeline_mode = #tpu.pipeline_mode<synchronous>, transform_indices = @transform_5, window_bounds = array<i64: 384, 128>}, {pipeline_mode = #tpu.pipeline_mode<synchronous>, transform_indices = @transform_6, window_bounds = array<i64: 1, 128>}, {pipeline_mode = #tpu.pipeline_mode<synchronous>, transform_indices = @transform_7, window_bounds = array<i64: 1, 128>}, {pipeline_mode = #tpu.pipeline_mode<synchronous>, transform_indices = @transform_8, window_bounds = array<i64: 1, 128>}, {pipeline_mode = #tpu.pipeline_mode<synchronous>, transform_indices = @transform_9, window_bounds = array<i64: 2, 16, 128>}]} {
    %c0 = arith.constant 0 : index
    %c0_0 = arith.constant 0 : index
    %c0_1 = arith.constant 0 : index
    %0 = vector.load %arg1[%c0, %c0_0, %c0_1] : memref<2x16x64xbf16, #tpu.memory_space<vmem>>, vector<2x16x64xbf16>
    %cst = arith.constant 0.000000e+00 : bf16
    %1 = vector.broadcast %cst : bf16 to vector<2x1x64xbf16>
    %2 = vector.extract_strided_slice %0 {offsets = [0, 0, 0], sizes = [2, 15, 64], strides = [1, 1, 1]} : vector<2x16x64xbf16> to vector<2x15x64xbf16>
    %3 = tpu.concatenate %1, %2 in 1 : vector<2x1x64xbf16>, vector<2x15x64xbf16> -> vector<2x16x64xbf16>
    %4 = vector.extract_strided_slice %0 {offsets = [0, 1, 0], sizes = [2, 15, 64], strides = [1, 1, 1]} : vector<2x16x64xbf16> to vector<2x15x64xbf16>
    %5 = tpu.concatenate %4, %1 in 1 : vector<2x15x64xbf16>, vector<2x1x64xbf16> -> vector<2x16x64xbf16>
    %6 = vector.shape_cast %3 : vector<2x16x64xbf16> to vector<32x64xbf16>
    %c0_2 = arith.constant 0 : index
    %c0_3 = arith.constant 0 : index
    %7 = vector.load %arg2[%c0_2, %c0_3] : memref<192x128xbf16, #tpu.memory_space<vmem>>, vector<64x128xbf16>
    %cst_4 = arith.constant dense<0.000000e+00> : vector<32x128xf32>
    %8 = tpu.matmul %6, %7, %cst_4 {dimension_numbers = #tpu.dot_dimension_numbers<[1], [0], [0], [1], [0, 0, 1, 1], [], []>} : vector<32x64xbf16>, vector<64x128xbf16>, vector<32x128xf32> -> vector<32x128xf32>
    %9 = vector.shape_cast %0 : vector<2x16x64xbf16> to vector<32x64xbf16>
    %c64 = arith.constant 64 : index
    %c0_5 = arith.constant 0 : index
    %10 = vector.load %arg2[%c64, %c0_5] : memref<192x128xbf16, #tpu.memory_space<vmem>>, vector<64x128xbf16>
    %cst_6 = arith.constant dense<0.000000e+00> : vector<32x128xf32>
    %11 = tpu.matmul %9, %10, %cst_6 {dimension_numbers = #tpu.dot_dimension_numbers<[1], [0], [0], [1], [0, 0, 1, 1], [], []>} : vector<32x64xbf16>, vector<64x128xbf16>, vector<32x128xf32> -> vector<32x128xf32>
    %12 = arith.addf %8, %11 : vector<32x128xf32>
    %13 = vector.shape_cast %5 : vector<2x16x64xbf16> to vector<32x64xbf16>
    %c128 = arith.constant 128 : index
    %c0_7 = arith.constant 0 : index
    %14 = vector.load %arg2[%c128, %c0_7] : memref<192x128xbf16, #tpu.memory_space<vmem>>, vector<64x128xbf16>
    %cst_8 = arith.constant dense<0.000000e+00> : vector<32x128xf32>
    %15 = tpu.matmul %13, %14, %cst_8 {dimension_numbers = #tpu.dot_dimension_numbers<[1], [0], [0], [1], [0, 0, 1, 1], [], []>} : vector<32x64xbf16>, vector<64x128xbf16>, vector<32x128xf32> -> vector<32x128xf32>
    %16 = arith.addf %12, %15 : vector<32x128xf32>
    %c0_9 = arith.constant 0 : index
    %c0_10 = arith.constant 0 : index
    %17 = vector.load %arg4[%c0_9, %c0_10] : memref<1x128xf32, #tpu.memory_space<vmem>>, vector<1x128xf32>
    %c0_11 = arith.constant 0 : index
    %c0_12 = arith.constant 0 : index
    %18 = vector.load %arg5[%c0_11, %c0_12] : memref<1x128xf32, #tpu.memory_space<vmem>>, vector<1x128xf32>
    %cst_13 = arith.constant dense<0.000000e+00> : vector<128xf32>
    %19 = vector.multi_reduction <add>, %16, %cst_13 [0] : vector<32x128xf32> to vector<128xf32>
    %20 = vector.shape_cast %19 : vector<128xf32> to vector<1x128xf32>
    %c8_i32 = arith.constant 8 : i32
    %21 = tpu.dynamic_rotate %20 by %c8_i32 dim 1 : vector<1x128xf32>, i32 -> vector<1x128xf32>
    %22 = arith.addf %20, %21 : vector<1x128xf32>
    %c16_i32 = arith.constant 16 : i32
    %23 = tpu.dynamic_rotate %22 by %c16_i32 dim 1 : vector<1x128xf32>, i32 -> vector<1x128xf32>
    %24 = arith.addf %22, %23 : vector<1x128xf32>
    %c32_i32 = arith.constant 32 : i32
    %25 = tpu.dynamic_rotate %24 by %c32_i32 dim 1 : vector<1x128xf32>, i32 -> vector<1x128xf32>
    %26 = arith.addf %24, %25 : vector<1x128xf32>
    %c64_i32 = arith.constant 64 : i32
    %27 = tpu.dynamic_rotate %26 by %c64_i32 dim 1 : vector<1x128xf32>, i32 -> vector<1x128xf32>
    %28 = arith.addf %26, %27 : vector<1x128xf32>
    %cst_14 = arith.constant 0.001953125 : f32
    %29 = vector.broadcast %cst_14 : f32 to vector<1x128xf32>
    %30 = arith.mulf %28, %29 : vector<1x128xf32>
    %31 = vector.broadcast %30 : vector<1x128xf32> to vector<32x128xf32>
    %32 = arith.subf %16, %31 : vector<32x128xf32>
    %33 = arith.mulf %32, %32 : vector<32x128xf32>
    %cst_15 = arith.constant dense<0.000000e+00> : vector<128xf32>
    %34 = vector.multi_reduction <add>, %33, %cst_15 [0] : vector<32x128xf32> to vector<128xf32>
    %35 = vector.shape_cast %34 : vector<128xf32> to vector<1x128xf32>
    %c8_i32_16 = arith.constant 8 : i32
    %36 = tpu.dynamic_rotate %35 by %c8_i32_16 dim 1 : vector<1x128xf32>, i32 -> vector<1x128xf32>
    %37 = arith.addf %35, %36 : vector<1x128xf32>
    %c16_i32_17 = arith.constant 16 : i32
    %38 = tpu.dynamic_rotate %37 by %c16_i32_17 dim 1 : vector<1x128xf32>, i32 -> vector<1x128xf32>
    %39 = arith.addf %37, %38 : vector<1x128xf32>
    %c32_i32_18 = arith.constant 32 : i32
    %40 = tpu.dynamic_rotate %39 by %c32_i32_18 dim 1 : vector<1x128xf32>, i32 -> vector<1x128xf32>
    %41 = arith.addf %39, %40 : vector<1x128xf32>
    %c64_i32_19 = arith.constant 64 : i32
    %42 = tpu.dynamic_rotate %41 by %c64_i32_19 dim 1 : vector<1x128xf32>, i32 -> vector<1x128xf32>
    %43 = arith.addf %41, %42 : vector<1x128xf32>
    %cst_20 = arith.constant 0.001953125 : f32
    %44 = vector.broadcast %cst_20 : f32 to vector<1x128xf32>
    %45 = arith.mulf %43, %44 : vector<1x128xf32>
    %cst_21 = arith.constant 9.99999974E-6 : f32
    %46 = vector.broadcast %cst_21 : f32 to vector<1x128xf32>
    %47 = arith.addf %45, %46 : vector<1x128xf32>
    %48 = math.rsqrt %47 : vector<1x128xf32>
    %49 = arith.mulf %17, %48 : vector<1x128xf32>
    %50 = arith.mulf %30, %49 : vector<1x128xf32>
    %51 = arith.subf %18, %50 : vector<1x128xf32>
    %52 = vector.broadcast %49 : vector<1x128xf32> to vector<32x128xf32>
    %53 = arith.mulf %16, %52 : vector<32x128xf32>
    %54 = vector.broadcast %51 : vector<1x128xf32> to vector<32x128xf32>
    %55 = arith.addf %53, %54 : vector<32x128xf32>
    %cst_22 = arith.constant 0.000000e+00 : f32
    %56 = vector.broadcast %cst_22 : f32 to vector<32x128xf32>
    %57 = arith.maximumf %55, %56 : vector<32x128xf32>
    %58 = arith.truncf %57 : vector<32x128xf32> to vector<32x128xbf16>
    %59 = vector.shape_cast %58 : vector<32x128xbf16> to vector<2x16x128xbf16>
    %cst_23 = arith.constant 0.000000e+00 : bf16
    %60 = vector.broadcast %cst_23 : bf16 to vector<2x1x128xbf16>
    %61 = vector.extract_strided_slice %59 {offsets = [0, 0, 0], sizes = [2, 15, 128], strides = [1, 1, 1]} : vector<2x16x128xbf16> to vector<2x15x128xbf16>
    %62 = tpu.concatenate %60, %61 in 1 : vector<2x1x128xbf16>, vector<2x15x128xbf16> -> vector<2x16x128xbf16>
    %63 = vector.extract_strided_slice %59 {offsets = [0, 1, 0], sizes = [2, 15, 128], strides = [1, 1, 1]} : vector<2x16x128xbf16> to vector<2x15x128xbf16>
    %64 = tpu.concatenate %63, %60 in 1 : vector<2x15x128xbf16>, vector<2x1x128xbf16> -> vector<2x16x128xbf16>
    %65 = vector.shape_cast %62 : vector<2x16x128xbf16> to vector<32x128xbf16>
    %c0_24 = arith.constant 0 : index
    %c0_25 = arith.constant 0 : index
    %66 = vector.load %arg6[%c0_24, %c0_25] : memref<384x128xbf16, #tpu.memory_space<vmem>>, vector<128x128xbf16>
    %cst_26 = arith.constant dense<0.000000e+00> : vector<32x128xf32>
    %67 = tpu.matmul %65, %66, %cst_26 {dimension_numbers = #tpu.dot_dimension_numbers<[1], [0], [0], [1], [0, 0, 1, 1], [], []>} : vector<32x128xbf16>, vector<128x128xbf16>, vector<32x128xf32> -> vector<32x128xf32>
    %68 = vector.shape_cast %59 : vector<2x16x128xbf16> to vector<32x128xbf16>
    %c128_27 = arith.constant 128 : index
    %c0_28 = arith.constant 0 : index
    %69 = vector.load %arg6[%c128_27, %c0_28] : memref<384x128xbf16, #tpu.memory_space<vmem>>, vector<128x128xbf16>
    %cst_29 = arith.constant dense<0.000000e+00> : vector<32x128xf32>
    %70 = tpu.matmul %68, %69, %cst_29 {dimension_numbers = #tpu.dot_dimension_numbers<[1], [0], [0], [1], [0, 0, 1, 1], [], []>} : vector<32x128xbf16>, vector<128x128xbf16>, vector<32x128xf32> -> vector<32x128xf32>
    %71 = arith.addf %67, %70 : vector<32x128xf32>
    %72 = vector.shape_cast %64 : vector<2x16x128xbf16> to vector<32x128xbf16>
    %c256 = arith.constant 256 : index
    %c0_30 = arith.constant 0 : index
    %73 = vector.load %arg6[%c256, %c0_30] : memref<384x128xbf16, #tpu.memory_space<vmem>>, vector<128x128xbf16>
    %cst_31 = arith.constant dense<0.000000e+00> : vector<32x128xf32>
    %74 = tpu.matmul %72, %73, %cst_31 {dimension_numbers = #tpu.dot_dimension_numbers<[1], [0], [0], [1], [0, 0, 1, 1], [], []>} : vector<32x128xbf16>, vector<128x128xbf16>, vector<32x128xf32> -> vector<32x128xf32>
    %75 = arith.addf %71, %74 : vector<32x128xf32>
    %c0_32 = arith.constant 0 : index
    %c0_33 = arith.constant 0 : index
    %76 = vector.load %arg8[%c0_32, %c0_33] : memref<1x128xf32, #tpu.memory_space<vmem>>, vector<1x128xf32>
    %c0_34 = arith.constant 0 : index
    %c0_35 = arith.constant 0 : index
    %77 = vector.load %arg9[%c0_34, %c0_35] : memref<1x128xf32, #tpu.memory_space<vmem>>, vector<1x128xf32>
    %cst_36 = arith.constant dense<0.000000e+00> : vector<128xf32>
    %78 = vector.multi_reduction <add>, %75, %cst_36 [0] : vector<32x128xf32> to vector<128xf32>
    %79 = vector.shape_cast %78 : vector<128xf32> to vector<1x128xf32>
    %c8_i32_37 = arith.constant 8 : i32
    %80 = tpu.dynamic_rotate %79 by %c8_i32_37 dim 1 : vector<1x128xf32>, i32 -> vector<1x128xf32>
    %81 = arith.addf %79, %80 : vector<1x128xf32>
    %c16_i32_38 = arith.constant 16 : i32
    %82 = tpu.dynamic_rotate %81 by %c16_i32_38 dim 1 : vector<1x128xf32>, i32 -> vector<1x128xf32>
    %83 = arith.addf %81, %82 : vector<1x128xf32>
    %c32_i32_39 = arith.constant 32 : i32
    %84 = tpu.dynamic_rotate %83 by %c32_i32_39 dim 1 : vector<1x128xf32>, i32 -> vector<1x128xf32>
    %85 = arith.addf %83, %84 : vector<1x128xf32>
    %c64_i32_40 = arith.constant 64 : i32
    %86 = tpu.dynamic_rotate %85 by %c64_i32_40 dim 1 : vector<1x128xf32>, i32 -> vector<1x128xf32>
    %87 = arith.addf %85, %86 : vector<1x128xf32>
    %cst_41 = arith.constant 0.001953125 : f32
    %88 = vector.broadcast %cst_41 : f32 to vector<1x128xf32>
    %89 = arith.mulf %87, %88 : vector<1x128xf32>
    %90 = vector.broadcast %89 : vector<1x128xf32> to vector<32x128xf32>
    %91 = arith.subf %75, %90 : vector<32x128xf32>
    %92 = arith.mulf %91, %91 : vector<32x128xf32>
    %cst_42 = arith.constant dense<0.000000e+00> : vector<128xf32>
    %93 = vector.multi_reduction <add>, %92, %cst_42 [0] : vector<32x128xf32> to vector<128xf32>
    %94 = vector.shape_cast %93 : vector<128xf32> to vector<1x128xf32>
    %c8_i32_43 = arith.constant 8 : i32
    %95 = tpu.dynamic_rotate %94 by %c8_i32_43 dim 1 : vector<1x128xf32>, i32 -> vector<1x128xf32>
    %96 = arith.addf %94, %95 : vector<1x128xf32>
    %c16_i32_44 = arith.constant 16 : i32
    %97 = tpu.dynamic_rotate %96 by %c16_i32_44 dim 1 : vector<1x128xf32>, i32 -> vector<1x128xf32>
    %98 = arith.addf %96, %97 : vector<1x128xf32>
    %c32_i32_45 = arith.constant 32 : i32
    %99 = tpu.dynamic_rotate %98 by %c32_i32_45 dim 1 : vector<1x128xf32>, i32 -> vector<1x128xf32>
    %100 = arith.addf %98, %99 : vector<1x128xf32>
    %c64_i32_46 = arith.constant 64 : i32
    %101 = tpu.dynamic_rotate %100 by %c64_i32_46 dim 1 : vector<1x128xf32>, i32 -> vector<1x128xf32>
    %102 = arith.addf %100, %101 : vector<1x128xf32>
    %cst_47 = arith.constant 0.001953125 : f32
    %103 = vector.broadcast %cst_47 : f32 to vector<1x128xf32>
    %104 = arith.mulf %102, %103 : vector<1x128xf32>
    %cst_48 = arith.constant 9.99999974E-6 : f32
    %105 = vector.broadcast %cst_48 : f32 to vector<1x128xf32>
    %106 = arith.addf %104, %105 : vector<1x128xf32>
    %107 = math.rsqrt %106 : vector<1x128xf32>
    %108 = arith.mulf %76, %107 : vector<1x128xf32>
    %109 = arith.mulf %89, %108 : vector<1x128xf32>
    %110 = arith.subf %77, %109 : vector<1x128xf32>
    %111 = vector.broadcast %108 : vector<1x128xf32> to vector<32x128xf32>
    %112 = arith.mulf %75, %111 : vector<32x128xf32>
    %113 = vector.broadcast %110 : vector<1x128xf32> to vector<32x128xf32>
    %114 = arith.addf %112, %113 : vector<32x128xf32>
    %cst_49 = arith.constant 0.000000e+00 : f32
    %115 = vector.broadcast %cst_49 : f32 to vector<32x128xf32>
    %116 = arith.maximumf %114, %115 : vector<32x128xf32>
    %117 = vector.shape_cast %116 : vector<32x128xf32> to vector<2x16x128xf32>
    %c0_50 = arith.constant 0 : index
    %c0_51 = arith.constant 0 : index
    %c0_52 = arith.constant 0 : index
    %118 = vector.load %arg10[%c0_50, %c0_51, %c0_52] : memref<2x16x128xf32, #tpu.memory_space<vmem>>, vector<2x16x128xf32>
    tpu.vector_store %arg10[%c0_50, %c0_51, %c0_52], %117 {strides = array<i32>} : memref<2x16x128xf32, #tpu.memory_space<vmem>>, vector<2x16x128xf32>,
    return
  }
  func.func @transform_0(%arg0: i32) -> (i32, i32, i32) {
    %c0_i32 = arith.constant 0 : i32
    %c0_i32_0 = arith.constant 0 : i32
    %c0_i32_1 = arith.constant 0 : i32
    %c0_i32_2 = arith.constant 0 : i32
    return %c0_i32, %c0_i32_0, %c0_i32_1 : i32, i32, i32
  }
  func.func @transform_1(%arg0: i32) -> (i32, i32) {
    %c0_i32 = arith.constant 0 : i32
    %c0_i32_0 = arith.constant 0 : i32
    %c0_i32_1 = arith.constant 0 : i32
    return %c0_i32, %c0_i32_0 : i32, i32
  }
  func.func @transform_2(%arg0: i32) -> (i32, i32) {
    %c0_i32 = arith.constant 0 : i32
    %c0_i32_0 = arith.constant 0 : i32
    %c0_i32_1 = arith.constant 0 : i32
    return %c0_i32, %c0_i32_0 : i32, i32
  }
  func.func @transform_3(%arg0: i32) -> (i32, i32) {
    %c0_i32 = arith.constant 0 : i32
    %c0_i32_0 = arith.constant 0 : i32
    %c0_i32_1 = arith.constant 0 : i32
    return %c0_i32, %c0_i32_0 : i32, i32
  }
  func.func @transform_4(%arg0: i32) -> (i32, i32) {
    %c0_i32 = arith.constant 0 : i32
    %c0_i32_0 = arith.constant 0 : i32
    %c0_i32_1 = arith.constant 0 : i32
    return %c0_i32, %c0_i32_0 : i32, i32
  }
  func.func @transform_5(%arg0: i32) -> (i32, i32) {
    %c0_i32 = arith.constant 0 : i32
    %c0_i32_0 = arith.constant 0 : i32
    %c0_i32_1 = arith.constant 0 : i32
    return %c0_i32, %c0_i32_0 : i32, i32
  }
  func.func @transform_6(%arg0: i32) -> (i32, i32) {
    %c0_i32 = arith.constant 0 : i32
    %c0_i32_0 = arith.constant 0 : i32
    %c0_i32_1 = arith.constant 0 : i32
    return %c0_i32, %c0_i32_0 : i32, i32
  }
  func.func @transform_7(%arg0: i32) -> (i32, i32) {
    %c0_i32 = arith.constant 0 : i32
    %c0_i32_0 = arith.constant 0 : i32
    %c0_i32_1 = arith.constant 0 : i32
    return %c0_i32, %c0_i32_0 : i32, i32
  }
  func.func @transform_8(%arg0: i32) -> (i32, i32) {
    %c0_i32 = arith.constant 0 : i32
    %c0_i32_0 = arith.constant 0 : i32
    %c0_i32_1 = arith.constant 0 : i32
    return %c0_i32, %c0_i32_0 : i32, i32
  }
  func.func @transform_9(%arg0: i32) -> (i32, i32, i32) {
    %c0_i32 = arith.constant 0 : i32
    %c0_i32_0 = arith.constant 0 : i32
    %c0_i32_1 = arith.constant 0 : i32
    %c0_i32_2 = arith.constant 0 : i32
    return %c0_i32, %c0_i32_0, %c0_i32_1 : i32, i32, i32
  }
}

</mosaic_0001>

<llo_original>
// kernel: tpu_custom_call.1
$region0: #{tpu_custom_call.1}
  #allocation0 [shape = 'u32[]', space=smem, size = 0x4, offset = 0x4, fixed_abs, tag = 'smem constant byte address 0x4 - core index']
  #allocation1 [shape = 'u32[144,128]{1,0:T(1,128)}', space=vmem, size = 0x12000, scoped, tag = 'internal scratch']
  %s0 = inlined_call_operand.hbm [shape: bf16[2,16,64], index: 0, kind: input, shape index: {}]
  %s1 = inlined_call_operand.hbm [shape: bf16[192,128], index: 1, kind: input, shape index: {}]
  %s2 = inlined_call_operand.vmem [shape: f32[1,128], index: 2, kind: input, shape index: {}]
  %s3 = inlined_call_operand.vmem [shape: f32[1,128], index: 3, kind: input, shape index: {}]
  %s4 = inlined_call_operand.vmem [shape: f32[1,128], index: 4, kind: input, shape index: {}]
  %s5 = inlined_call_operand.hbm [shape: bf16[384,128], index: 5, kind: input, shape index: {}]
  %s6 = inlined_call_operand.vmem [shape: f32[1,128], index: 6, kind: input, shape index: {}]
  %s7 = inlined_call_operand.vmem [shape: f32[1,128], index: 7, kind: input, shape index: {}]
  %s8 = inlined_call_operand.vmem [shape: f32[1,128], index: 8, kind: input, shape index: {}]
  %s9 = inlined_call_operand.hbm [shape: f32[2,16,128], index: 9, kind: output, shape index: {}]
  %s10 = sld [smem:[#allocation0]]
  $region58: #{tpu_custom_call.1} parent=0
    _
  %s12 = ssub.s32 1, %s10
  %s13 = scalar_select 0, %s12, %s10
  $region1: #{tpu_custom_call.1} parent=0
    #allocation2 [shape = 'u8[8192]{0}', space=vmem, size = 0x2000, scoped, tag = 'input window, operand 0, single buffered']
    #allocation3 [shape = 's32[1]{0}', space=sflag, size = 0x4, scoped, tag = 'scoped memory for tpu_custom_call.1']
    #allocation4 [shape = 's32[1]{0}', space=sflag, size = 0x4, scoped, tag = 'scoped memory for tpu_custom_call.1']
    #allocation5 [shape = 'u8[49152]{0}', space=vmem, size = 0xc000, scoped, tag = 'input window, operand 1, single buffered']
    #allocation6 [shape = 's32[1]{0}', space=sflag, size = 0x4, scoped, tag = 'scoped memory for tpu_custom_call.1']
    #allocation7 [shape = 'u8[98304]{0}', space=vmem, size = 0x18000, scoped, tag = 'input window, operand 5, single buffered']
    #allocation8 [shape = 'u8[16384]{0}', space=vmem, size = 0x4000, scoped, tag = 'output window, operand 0, single buffered']
    %14 = vsyncpa [#allocation3], 0
    %15 = vsyncpa [#allocation6], 0
    %16 = vsyncpa [#allocation4], 0
    // Predicated region
    $region2: #{tpu_custom_call.1} parent=1 // pred_check
      _
    $region3: #{tpu_custom_call.1} parent=1 // pred_check_branch
      %18 = sbr.rel (0) target = $region5
    $region4: #{tpu_custom_call.1} parent=1 // pred_region
      %s20 = ssub.s32 256, 256
      %21 = vsyncadd [#allocation3], %s20
      %s22 = sshll.u32 [#allocation2], 4
      %s23 = int_to_ptr.vmem [resolvable:$true] %s22
      %28 = dma.hbm_to_vmem [thread:$0]  %s0, 256, %s23, [#allocation3], 64, 64, 4
    $region5: #{tpu_custom_call.1} parent=1 // pred_fallthru
      _
    // Predicated region
    $region6: #{tpu_custom_call.1} parent=1 // pred_check
      _
    $region7: #{tpu_custom_call.1} parent=1 // pred_check_branch
      %30 = sbr.rel (0) target = $region9
    $region8: #{tpu_custom_call.1} parent=1 // pred_region
      %s32 = ssub.s32 1536, 1536
      %33 = vsyncadd [#allocation6], %s32
      %s34 = sshll.u32 [#allocation5], 4
      %s35 = int_to_ptr.vmem [resolvable:$true] %s34
      %40 = dma.hbm_to_vmem [thread:$0]  %s1, 1536, %s35, [#allocation6], 64, 64, 4
    $region9: #{tpu_custom_call.1} parent=1 // pred_fallthru
      _
    // Predicated region
    $region10: #{tpu_custom_call.1} parent=1 // pred_check
      _
    $region11: #{tpu_custom_call.1} parent=1 // pred_check_branch
      %42 = sbr.rel (0) target = $region13
    $region12: #{tpu_custom_call.1} parent=1 // pred_region
      _
    $region13: #{tpu_custom_call.1} parent=1 // pred_fallthru
      _
    // Predicated region
    $region14: #{tpu_custom_call.1} parent=1 // pred_check
      _
    $region15: #{tpu_custom_call.1} parent=1 // pred_check_branch
      %44 = sbr.rel (0) target = $region17
    $region16: #{tpu_custom_call.1} parent=1 // pred_region
      _
    $region17: #{tpu_custom_call.1} parent=1 // pred_fallthru
      _
    // Predicated region
    $region18: #{tpu_custom_call.1} parent=1 // pred_check
      _
    $region19: #{tpu_custom_call.1} parent=1 // pred_check_branch
      %46 = sbr.rel (0) target = $region21
    $region20: #{tpu_custom_call.1} parent=1 // pred_region
      _
    $region21: #{tpu_custom_call.1} parent=1 // pred_fallthru
      _
    // Predicated region
    $region22: #{tpu_custom_call.1} parent=1 // pred_check
      _
    $region23: #{tpu_custom_call.1} parent=1 // pred_check_branch
      %48 = sbr.rel (0) target = $region25
    $region24: #{tpu_custom_call.1} parent=1 // pred_region
      %s50 = ssub.s32 3072, 3072
      %51 = vsyncadd [#allocation6], %s50
      %s52 = sshll.u32 [#allocation7], 4
      %s53 = int_to_ptr.vmem [resolvable:$true] %s52
      %58 = dma.hbm_to_vmem [thread:$0]  %s5, 3072, %s53, [#allocation6], 64, 64, 4
    $region25: #{tpu_custom_call.1} parent=1 // pred_fallthru
      _
    // Predicated region
    $region26: #{tpu_custom_call.1} parent=1 // pred_check
      _
    $region27: #{tpu_custom_call.1} parent=1 // pred_check_branch
      %60 = sbr.rel (0) target = $region29
    $region28: #{tpu_custom_call.1} parent=1 // pred_region
      _
    $region29: #{tpu_custom_call.1} parent=1 // pred_fallthru
      _
    // Predicated region
    $region30: #{tpu_custom_call.1} parent=1 // pred_check
      _
    $region31: #{tpu_custom_call.1} parent=1 // pred_check_branch
      %62 = sbr.rel (0) target = $region33
    $region32: #{tpu_custom_call.1} parent=1 // pred_region
      _
    $region33: #{tpu_custom_call.1} parent=1 // pred_fallthru
      _
    // Predicated region
    $region34: #{tpu_custom_call.1} parent=1 // pred_check
      _
    $region35: #{tpu_custom_call.1} parent=1 // pred_check_branch
      %64 = sbr.rel (0) target = $region37
    $region36: #{tpu_custom_call.1} parent=1 // pred_region
      _
    $region37: #{tpu_custom_call.1} parent=1 // pred_fallthru
      _
    // Predicated region
    $region38: #{tpu_custom_call.1} parent=1 // pred_check
      _
    $region39: #{tpu_custom_call.1} parent=1 // pred_check_branch
      %66 = sbr.rel (0) target = $region41
    $region40: #{tpu_custom_call.1} parent=1 // pred_region
      %67 = dma.done [#allocation3], 256
    $region41: #{tpu_custom_call.1} parent=1 // pred_fallthru
      _
    // Predicated region
    $region42: #{tpu_custom_call.1} parent=1 // pred_check
      _
    $region43: #{tpu_custom_call.1} parent=1 // pred_check_branch
      %69 = sbr.rel (0) target = $region45
    $region44: #{tpu_custom_call.1} parent=1 // pred_region
      %70 = dma.done [#allocation6], 1536
    $region45: #{tpu_custom_call.1} parent=1 // pred_fallthru
      _
    // Predicated region
    $region46: #{tpu_custom_call.1} parent=1 // pred_check
      _
    $region47: #{tpu_custom_call.1} parent=1 // pred_check_branch
      %72 = sbr.rel (0) target = $region49
    $region48: #{tpu_custom_call.1} parent=1 // pred_region
      %73 = dma.done [#allocation6], 3072
    $region49: #{tpu_custom_call.1} parent=1 // pred_fallthru
      _
    %v75 = vld [vmem:[#allocation2] sm:$0xf]
    %v76 = vld [vmem:[#allocation2 + $0x4] sm:$0xf]
    %v77 = vld [vmem:[#allocation2 + $0x8] sm:$0xf]
    %v78 = vld [vmem:[#allocation2 + $0xc] sm:$0xf]
    %v83 = vunpack.c.l.b16 %v75
    %v84 = vunpack.c.l.b16 %v76
    %v85 = vunpack.c.l.b16 %v77
    %v86 = vunpack.c.l.b16 %v78
    %v87 = vpack.c.b16 %v84, %v83
    %v88 = vpack.c.b16 %v86, %v85
    %v90 = vshrl.u32 %v87, 16
    %v92 = vrot.slane %v90, 7
    %v93 = vshll.u32 %v87, 16
    %v95 = vor.u32 %v92, %v93
    %v97 = vshrl.u32 %v88, 16
    %v99 = vrot.slane %v97, 7
    %v100 = vshll.u32 %v88, 16
    %v102 = vor.u32 %v99, %v100
    %vm105 = vcmask 1040384
    %vm106 = vsmask.f32 256
    %vm107 = vmand %vm105, %vm106
    %v108 = vsel %vm107, 0, %v95
    %v109 = vsel %vm107, 0, %v102
    %v110 = vrot.slane %v93, 1
    %v111 = vor.u32 %v90, %v110
    %v112 = vrot.slane %v100, 1
    %v113 = vor.u32 %v97, %v112
    %vm116 = vcmask 1047552
    %vm117 = vsmask.f32 7424
    %vm118 = vmand %vm116, %vm117
    %v119 = vsel %vm118, %v111, 0
    %v120 = vsel %vm118, %v113, 0
    %v121 = vld [vmem:[#allocation5] sm:$0xf]
    %v122 = vld [vmem:[#allocation5 + $0x4] sm:$0xf]
    %v123 = vld [vmem:[#allocation5 + $0x8] sm:$0xf]
    %v124 = vld [vmem:[#allocation5 + $0xc] sm:$0xf]
    %v125 = vld [vmem:[#allocation5 + $0x10] sm:$0xf]
    %v126 = vld [vmem:[#allocation5 + $0x14] sm:$0xf]
    %v127 = vld [vmem:[#allocation5 + $0x18] sm:$0xf]
    %v128 = vld [vmem:[#allocation5 + $0x1c] sm:$0xf]
    %v129 = vld [vmem:[#allocation5 + $0x20] sm:$0xf]
    %v130 = vld [vmem:[#allocation5 + $0x24] sm:$0xf]
    %v131 = vld [vmem:[#allocation5 + $0x28] sm:$0xf]
    %v132 = vld [vmem:[#allocation5 + $0x2c] sm:$0xf]
    %v133 = vld [vmem:[#allocation5 + $0x30] sm:$0xf]
    %v134 = vld [vmem:[#allocation5 + $0x34] sm:$0xf]
    %v135 = vld [vmem:[#allocation5 + $0x38] sm:$0xf]
    %v136 = vld [vmem:[#allocation5 + $0x3c] sm:$0xf]
    %v145 = vunpack.c.l.b16 %v129
    %v146 = vunpack.c.l.b16 %v130
    %v147 = vunpack.c.l.b16 %v131
    %v148 = vunpack.c.l.b16 %v132
    %v149 = vunpack.c.l.b16 %v133
    %v150 = vunpack.c.l.b16 %v134
    %v151 = vunpack.c.l.b16 %v135
    %v152 = vunpack.c.l.b16 %v136
    %v153 = vpack.c.b16 %v146, %v145
    %v154 = vpack.c.b16 %v148, %v147
    %v155 = vpack.c.b16 %v150, %v149
    %v156 = vpack.c.b16 %v152, %v151
    %vm161 = vcmask 523264
    %v162 = vsel %vm161, %v87, 0
    %v164 = vsel %vm161, %v88, 0
    %166 = vmatprep.subr.bf16.mxu0 0
    %167 = vmatpush1.bf16.msra.mxu0 0
    %168 = vmatprep.subr.bf16.mxu0 0
    %169 = vmatpush1.bf16.msra.mxu0 0
    %170 = vmatprep.subr.bf16.mxu0 0
    %171 = vmatpush1.bf16.msra.mxu0 0
    %172 = vmatprep.subr.bf16.mxu0 0
    %173 = vmatpush1.bf16.msra.mxu0 0
    %174 = vmatprep.subr.bf16.mxu0 0
    %175 = vmatpush1.bf16.msra.mxu0 %v156
    %176 = vmatprep.subr.bf16.mxu0 0
    %177 = vmatpush1.bf16.msra.mxu0 %v155
    %178 = vmatprep.subr.bf16.mxu0 0
    %179 = vmatpush1.bf16.msra.mxu0 %v154
    %180 = vmatprep.subr.bf16.mxu0 0
    %181 = vmatpush1.bf16.msra.mxu0 %v153
    %182 = vmatprep.subr.bf16.mxu0 0
    %183 = vmatpush2.bf16.msra.mxu0 0
    %184 = vmatprep.subr.bf16.mxu0 0
    %185 = vmatpush2.bf16.msra.mxu0 0
    %186 = vmatprep.subr.bf16.mxu0 0
    %187 = vmatpush2.bf16.msra.mxu0 0
    %188 = vmatprep.subr.bf16.mxu0 0
    %189 = vmatpush2.bf16.msra.mxu0 0
    %190 = vmatprep.subr.bf16.mxu0 0
    %191 = vmatpush2.bf16.msra.mxu0 0
    %192 = vmatprep.subr.bf16.mxu0 0
    %193 = vmatpush2.bf16.msra.mxu0 0
    %194 = vmatprep.subr.bf16.mxu0 0
    %195 = vmatpush2.bf16.msra.mxu0 0
    %196 = vmatprep.subr.bf16.mxu0 0
    %197 = vmatpush2.bf16.msra.mxu0 0
    %198 = vmatprep.mubr.bf16.mxu0 0
    %199 = vmatmul.mubr.bf16.gmra.mxu0 %v162
    %v200 = vpop.f32.mrf.mxu0
    %v201 = vadd.f32 0.0, %v200
    %v202 = vpop.f32.mrf.mxu0
    %v203 = vpop.f32.mrf.mxu0
    %v204 = vadd.f32 0.0, %v203
    %v205 = vpop.f32.mrf.mxu0
    %206 = vmatprep.mubr.bf16.mxu0 0
    %207 = vmatmul.mubr.bf16.gmra.mxu0 %v164
    %v208 = vpop.f32.mrf.mxu0
    %v209 = vadd.f32 0.0, %v208
    %v210 = vpop.f32.mrf.mxu0
    %v211 = vpop.f32.mrf.mxu0
    %v212 = vadd.f32 0.0, %v211
    %v213 = vpop.f32.mrf.mxu0
    %214 = vdwg.mxu0
    %v223 = vunpack.c.l.b16 %v121
    %v224 = vunpack.c.l.b16 %v122
    %v225 = vunpack.c.l.b16 %v123
    %v226 = vunpack.c.l.b16 %v124
    %v227 = vunpack.c.l.b16 %v125
    %v228 = vunpack.c.l.b16 %v126
    %v229 = vunpack.c.l.b16 %v127
    %v230 = vunpack.c.l.b16 %v128
    %v231 = vpack.c.b16 %v224, %v223
    %v232 = vpack.c.b16 %v226, %v225
    %v233 = vpack.c.b16 %v228, %v227
    %v234 = vpack.c.b16 %v230, %v229
    %v240 = vsel %vm161, %v108, 0
    %v243 = vsel %vm161, %v109, 0
    %245 = vmatprep.subr.bf16.mxu0 0
    %246 = vmatpush1.bf16.msra.mxu0 0
    %247 = vmatprep.subr.bf16.mxu0 0
    %248 = vmatpush1.bf16.msra.mxu0 0
    %249 = vmatprep.subr.bf16.mxu0 0
    %250 = vmatpush1.bf16.msra.mxu0 0
    %251 = vmatprep.subr.bf16.mxu0 0
    %252 = vmatpush1.bf16.msra.mxu0 0
    %253 = vmatprep.subr.bf16.mxu0 0
    %254 = vmatpush1.bf16.msra.mxu0 %v234
    %255 = vmatprep.subr.bf16.mxu0 0
    %256 = vmatpush1.bf16.msra.mxu0 %v233
    %257 = vmatprep.subr.bf16.mxu0 0
    %258 = vmatpush1.bf16.msra.mxu0 %v232
    %259 = vmatprep.subr.bf16.mxu0 0
    %260 = vmatpush1.bf16.msra.mxu0 %v231
    %261 = vmatprep.subr.bf16.mxu0 0
    %262 = vmatpush2.bf16.msra.mxu0 0
    %263 = vmatprep.subr.bf16.mxu0 0
    %264 = vmatpush2.bf16.msra.mxu0 0
    %265 = vmatprep.subr.bf16.mxu0 0
    %266 = vmatpush2.bf16.msra.mxu0 0
    %267 = vmatprep.subr.bf16.mxu0 0
    %268 = vmatpush2.bf16.msra.mxu0 0
    %269 = vmatprep.subr.bf16.mxu0 0
    %270 = vmatpush2.bf16.msra.mxu0 0
    %271 = vmatprep.subr.bf16.mxu0 0
    %272 = vmatpush2.bf16.msra.mxu0 0
    %273 = vmatprep.subr.bf16.mxu0 0
    %274 = vmatpush2.bf16.msra.mxu0 0
    %275 = vmatprep.subr.bf16.mxu0 0
    %276 = vmatpush2.bf16.msra.mxu0 0
    %277 = vmatprep.mubr.bf16.mxu0 0
    %278 = vmatmul.mubr.bf16.gmra.mxu0 %v240
    %v279 = vpop.f32.mrf.mxu0
    %v280 = vadd.f32 %v201, %v279
    %v281 = vpop.f32.mrf.mxu0
    %v282 = vpop.f32.mrf.mxu0
    %v283 = vadd.f32 %v204, %v282
    %v284 = vpop.f32.mrf.mxu0
    %285 = vmatprep.mubr.bf16.mxu0 0
    %286 = vmatmul.mubr.bf16.gmra.mxu0 %v243
    %v287 = vpop.f32.mrf.mxu0
    %v288 = vadd.f32 %v209, %v287
    %v289 = vpop.f32.mrf.mxu0
    %v290 = vpop.f32.mrf.mxu0
    %v291 = vadd.f32 %v212, %v290
    %v292 = vpop.f32.mrf.mxu0
    %293 = vdwg.mxu0
    %v294 = vld [vmem:[#allocation5 + $0x40] sm:$0xf]
    %v295 = vld [vmem:[#allocation5 + $0x44] sm:$0xf]
    %v296 = vld [vmem:[#allocation5 + $0x48] sm:$0xf]
    %v297 = vld [vmem:[#allocation5 + $0x4c] sm:$0xf]
    %v298 = vld [vmem:[#allocation5 + $0x50] sm:$0xf]
    %v299 = vld [vmem:[#allocation5 + $0x54] sm:$0xf]
    %v300 = vld [vmem:[#allocation5 + $0x58] sm:$0xf]
    %v301 = vld [vmem:[#allocation5 + $0x5c] sm:$0xf]
    %v310 = vunpack.c.l.b16 %v294
    %v311 = vunpack.c.l.b16 %v295
    %v312 = vunpack.c.l.b16 %v296
    %v313 = vunpack.c.l.b16 %v297
    %v314 = vunpack.c.l.b16 %v298
    %v315 = vunpack.c.l.b16 %v299
    %v316 = vunpack.c.l.b16 %v300
    %v317 = vunpack.c.l.b16 %v301
    %v318 = vpack.c.b16 %v311, %v310
    %v319 = vpack.c.b16 %v313, %v312
    %v320 = vpack.c.b16 %v315, %v314
    %v321 = vpack.c.b16 %v317, %v316
    %v327 = vsel %vm161, %v119, 0
    %v330 = vsel %vm161, %v120, 0
    %332 = vmatprep.subr.bf16.mxu0 0
    %333 = vmatpush1.bf16.msra.mxu0 0
    %334 = vmatprep.subr.bf16.mxu0 0
    %335 = vmatpush1.bf16.msra.mxu0 0
    %336 = vmatprep.subr.bf16.mxu0 0
    %337 = vmatpush1.bf16.msra.mxu0 0
    %338 = vmatprep.subr.bf16.mxu0 0
    %339 = vmatpush1.bf16.msra.mxu0 0
    %340 = vmatprep.subr.bf16.mxu0 0
    %341 = vmatpush1.bf16.msra.mxu0 %v321
    %342 = vmatprep.subr.bf16.mxu0 0
    %343 = vmatpush1.bf16.msra.mxu0 %v320
    %344 = vmatprep.subr.bf16.mxu0 0
    %345 = vmatpush1.bf16.msra.mxu0 %v319
    %346 = vmatprep.subr.bf16.mxu0 0
    %347 = vmatpush1.bf16.msra.mxu0 %v318
    %348 = vmatprep.subr.bf16.mxu0 0
    %349 = vmatpush2.bf16.msra.mxu0 0
    %350 = vmatprep.subr.bf16.mxu0 0
    %351 = vmatpush2.bf16.msra.mxu0 0
    %352 = vmatprep.subr.bf16.mxu0 0
    %353 = vmatpush2.bf16.msra.mxu0 0
    %354 = vmatprep.subr.bf16.mxu0 0
    %355 = vmatpush2.bf16.msra.mxu0 0
    %356 = vmatprep.subr.bf16.mxu0 0
    %357 = vmatpush2.bf16.msra.mxu0 0
    %358 = vmatprep.subr.bf16.mxu0 0
    %359 = vmatpush2.bf16.msra.mxu0 0
    %360 = vmatprep.subr.bf16.mxu0 0
    %361 = vmatpush2.bf16.msra.mxu0 0
    %362 = vmatprep.subr.bf16.mxu0 0
    %363 = vmatpush2.bf16.msra.mxu0 0
    %364 = vmatprep.mubr.bf16.mxu0 0
    %365 = vmatmul.mubr.bf16.gmra.mxu0 %v327
    %v366 = vpop.f32.mrf.mxu0
    %v367 = vadd.f32 0.0, %v366
    %v368 = vpop.f32.mrf.mxu0
    %v369 = vpop.f32.mrf.mxu0
    %v370 = vadd.f32 0.0, %v369
    %v371 = vpop.f32.mrf.mxu0
    %372 = vmatprep.mubr.bf16.mxu0 0
    %373 = vmatmul.mubr.bf16.gmra.mxu0 %v330
    %v374 = vpop.f32.mrf.mxu0
    %v375 = vadd.f32 0.0, %v374
    %v376 = vpop.f32.mrf.mxu0
    %v377 = vpop.f32.mrf.mxu0
    %v378 = vadd.f32 0.0, %v377
    %v379 = vpop.f32.mrf.mxu0
    %380 = vdwg.mxu0
    %v381 = vadd.f32 %v280, %v367
    %v382 = vadd.f32 %v283, %v370
    %v383 = vadd.f32 %v288, %v375
    %v384 = vadd.f32 %v291, %v378
    %v385 = vld [vmem:[%s3] sm:$0x1]
    %v386 = vld [vmem:[%s4] sm:$0x1]
    %v387 = vadd.f32 %v381, %v382
    %v388 = vadd.f32 %v387, %v383
    %v389 = vadd.f32 %v388, %v384
    %v390 = vrot.slane %v389, 4
    %v391 = vadd.f32 %v389, %v390
    %v392 = vrot.slane %v391, 2
    %v393 = vadd.f32 %v391, %v392
    %v394 = vrot.slane %v393, 1
    %v395 = vadd.f32 %v393, %v394
    %396 = vrot.lane.b32.xlu0 %v395, 8
    %v397 = vpop.permute.xlu0 %396
    %v398 = vadd.f32 %v395, %v397
    %399 = vrot.lane.b32.xlu0 %v398, 16
    %v400 = vpop.permute.xlu0 %399
    %v401 = vadd.f32 %v398, %v400
    %402 = vrot.lane.b32.xlu0 %v401, 32
    %v403 = vpop.permute.xlu0 %402
    %v404 = vadd.f32 %v401, %v403
    %405 = vrot.lane.b32.xlu0 %v404, 64
    %v406 = vpop.permute.xlu0 %405
    %v407 = vadd.f32 %v404, %v406
    %v408 = vmul.f32 %v407, 0.001953125
    %v409 = vlaneseq
    %v410 = vshrl.u32 %v409, 7
    %v411 = vsub.s32 0, %v410
    %v412 = vrot.slane %v408, %v411
    %v413 = vsub.f32 %v381, %v412
    %v414 = vsub.f32 %v382, %v412
    %v415 = vsub.f32 %v383, %v412
    %v416 = vsub.f32 %v384, %v412
    %v417 = vmul.f32 %v413, %v413
    %v418 = vmul.f32 %v414, %v414
    %v419 = vmul.f32 %v415, %v415
    %v420 = vmul.f32 %v416, %v416
    %v421 = vadd.f32 %v417, %v418
    %v422 = vadd.f32 %v421, %v419
    %v423 = vadd.f32 %v422, %v420
    %v424 = vrot.slane %v423, 4
    %v425 = vadd.f32 %v423, %v424
    %v426 = vrot.slane %v425, 2
    %v427 = vadd.f32 %v425, %v426
    %v428 = vrot.slane %v427, 1
    %v429 = vadd.f32 %v427, %v428
    %430 = vrot.lane.b32.xlu0 %v429, 8
    %v431 = vpop.permute.xlu0 %430
    %v432 = vadd.f32 %v429, %v431
    %433 = vrot.lane.b32.xlu0 %v432, 16
    %v434 = vpop.permute.xlu0 %433
    %v435 = vadd.f32 %v432, %v434
    %436 = vrot.lane.b32.xlu0 %v435, 32
    %v437 = vpop.permute.xlu0 %436
    %v438 = vadd.f32 %v435, %v437
    %439 = vrot.lane.b32.xlu0 %v438, 64
    %v440 = vpop.permute.xlu0 %439
    %v441 = vadd.f32 %v438, %v440
    %v442 = vmul.f32 %v441, 0.001953125
    %v443 = vadd.f32 %v442, 1e-05
    %v444 = vrsqrt.pop %v443
    %v445 = vmul.f32 %v385, %v444
    %v446 = vmul.f32 %v408, %v445
    %v447 = vsub.f32 %v386, %v446
    %v449 = vlaneseq
    %v450 = vshrl.u32 %v449, 7
    %v451 = vsub.s32 0, %v450
    %v452 = vrot.slane %v445, %v451
    %v454 = vmul.f32 %v381, %v452
    %v455 = vmul.f32 %v382, %v452
    %v456 = vmul.f32 %v383, %v452
    %v457 = vmul.f32 %v384, %v452
    %v459 = vlaneseq
    %v460 = vshrl.u32 %v459, 7
    %v461 = vsub.s32 0, %v460
    %v462 = vrot.slane %v447, %v461
    %v464 = vadd.f32 %v454, %v462
    %v465 = vadd.f32 %v455, %v462
    %v466 = vadd.f32 %v456, %v462
    %v467 = vadd.f32 %v457, %v462
    %v468 = vmax.f32 %v464, 0.0
    %v469 = vmax.f32 %v465, 0.0
    %v470 = vmax.f32 %v466, 0.0
    %v471 = vmax.f32 %v467, 0.0
    %v472 = vpack.c.bf16 %v469, %v468
    %v473 = vpack.c.bf16 %v471, %v470
    %v475 = vshrl.u32 %v472, 16
    %v477 = vrot.slane %v475, 7
    %v478 = vshll.u32 %v472, 16
    %v480 = vor.u32 %v477, %v478
    %v482 = vshrl.u32 %v473, 16
    %v484 = vrot.slane %v482, 7
    %v485 = vshll.u32 %v473, 16
    %v487 = vor.u32 %v484, %v485
    %v490 = vsel %vm107, 0, %v480
    %v491 = vsel %vm107, 0, %v487
    %v492 = vrot.slane %v478, 1
    %v493 = vor.u32 %v475, %v492
    %v494 = vrot.slane %v485, 1
    %v495 = vor.u32 %v482, %v494
    %v498 = vsel %vm118, %v493, 0
    %v499 = vsel %vm118, %v495, 0
    %v500 = vld [vmem:[#allocation7] sm:$0xf]
    %v501 = vld [vmem:[#allocation7 + $0x4] sm:$0xf]
    %v502 = vld [vmem:[#allocation7 + $0x8] sm:$0xf]
    %v503 = vld [vmem:[#allocation7 + $0xc] sm:$0xf]
    %v504 = vld [vmem:[#allocation7 + $0x10] sm:$0xf]
    %v505 = vld [vmem:[#allocation7 + $0x14] sm:$0xf]
    %v506 = vld [vmem:[#allocation7 + $0x18] sm:$0xf]
    %v507 = vld [vmem:[#allocation7 + $0x1c] sm:$0xf]
    %v508 = vld [vmem:[#allocation7 + $0x20] sm:$0xf]
    %v509 = vld [vmem:[#allocation7 + $0x24] sm:$0xf]
    %v510 = vld [vmem:[#allocation7 + $0x28] sm:$0xf]
    %v511 = vld [vmem:[#allocation7 + $0x2c] sm:$0xf]
    %v512 = vld [vmem:[#allocation7 + $0x30] sm:$0xf]
    %v513 = vld [vmem:[#allocation7 + $0x34] sm:$0xf]
    %v514 = vld [vmem:[#allocation7 + $0x38] sm:$0xf]
    %v515 = vld [vmem:[#allocation7 + $0x3c] sm:$0xf]
    %v516 = vld [vmem:[#allocation7 + $0x40] sm:$0xf]
    %v517 = vld [vmem:[#allocation7 + $0x44] sm:$0xf]
    %v518 = vld [vmem:[#allocation7 + $0x48] sm:$0xf]
    %v519 = vld [vmem:[#allocation7 + $0x4c] sm:$0xf]
    %v520 = vld [vmem:[#allocation7 + $0x50] sm:$0xf]
    %v521 = vld [vmem:[#allocation7 + $0x54] sm:$0xf]
    %v522 = vld [vmem:[#allocation7 + $0x58] sm:$0xf]
    %v523 = vld [vmem:[#allocation7 + $0x5c] sm:$0xf]
    %v524 = vld [vmem:[#allocation7 + $0x60] sm:$0xf]
    %v525 = vld [vmem:[#allocation7 + $0x64] sm:$0xf]
    %v526 = vld [vmem:[#allocation7 + $0x68] sm:$0xf]
    %v527 = vld [vmem:[#allocation7 + $0x6c] sm:$0xf]
    %v528 = vld [vmem:[#allocation7 + $0x70] sm:$0xf]
    %v529 = vld [vmem:[#allocation7 + $0x74] sm:$0xf]
    %v530 = vld [vmem:[#allocation7 + $0x78] sm:$0xf]
    %v531 = vld [vmem:[#allocation7 + $0x7c] sm:$0xf]
    %v548 = vunpack.c.l.b16 %v516
    %v549 = vunpack.c.l.b16 %v517
    %v550 = vunpack.c.l.b16 %v518
    %v551 = vunpack.c.l.b16 %v519
    %v552 = vunpack.c.l.b16 %v520
    %v553 = vunpack.c.l.b16 %v521
    %v554 = vunpack.c.l.b16 %v522
    %v555 = vunpack.c.l.b16 %v523
    %v556 = vunpack.c.l.b16 %v524
    %v557 = vunpack.c.l.b16 %v525
    %v558 = vunpack.c.l.b16 %v526
    %v559 = vunpack.c.l.b16 %v527
    %v560 = vunpack.c.l.b16 %v528
    %v561 = vunpack.c.l.b16 %v529
    %v562 = vunpack.c.l.b16 %v530
    %v563 = vunpack.c.l.b16 %v531
    %v564 = vpack.c.b16 %v549, %v548
    %v565 = vpack.c.b16 %v551, %v550
    %v566 = vpack.c.b16 %v553, %v552
    %v567 = vpack.c.b16 %v555, %v554
    %v568 = vpack.c.b16 %v557, %v556
    %v569 = vpack.c.b16 %v559, %v558
    %v570 = vpack.c.b16 %v561, %v560
    %v571 = vpack.c.b16 %v563, %v562
    %580 = vmatprep.subr.bf16.mxu0 0
    %581 = vmatpush1.bf16.msra.mxu0 %v571
    %582 = vmatprep.subr.bf16.mxu0 0
    %583 = vmatpush1.bf16.msra.mxu0 %v570
    %584 = vmatprep.subr.bf16.mxu0 0
    %585 = vmatpush1.bf16.msra.mxu0 %v569
    %586 = vmatprep.subr.bf16.mxu0 0
    %587 = vmatpush1.bf16.msra.mxu0 %v568
    %588 = vmatprep.subr.bf16.mxu0 0
    %589 = vmatpush1.bf16.msra.mxu0 %v567
    %590 = vmatprep.subr.bf16.mxu0 0
    %591 = vmatpush1.bf16.msra.mxu0 %v566
    %592 = vmatprep.subr.bf16.mxu0 0
    %593 = vmatpush1.bf16.msra.mxu0 %v565
    %594 = vmatprep.subr.bf16.mxu0 0
    %595 = vmatpush1.bf16.msra.mxu0 %v564
    %596 = vmatprep.subr.bf16.mxu0 0
    %597 = vmatpush2.bf16.msra.mxu0 0
    %598 = vmatprep.subr.bf16.mxu0 0
    %599 = vmatpush2.bf16.msra.mxu0 0
    %600 = vmatprep.subr.bf16.mxu0 0
    %601 = vmatpush2.bf16.msra.mxu0 0
    %602 = vmatprep.subr.bf16.mxu0 0
    %603 = vmatpush2.bf16.msra.mxu0 0
    %604 = vmatprep.subr.bf16.mxu0 0
    %605 = vmatpush2.bf16.msra.mxu0 0
    %606 = vmatprep.subr.bf16.mxu0 0
    %607 = vmatpush2.bf16.msra.mxu0 0
    %608 = vmatprep.subr.bf16.mxu0 0
    %609 = vmatpush2.bf16.msra.mxu0 0
    %610 = vmatprep.subr.bf16.mxu0 0
    %611 = vmatpush2.bf16.msra.mxu0 0
    %612 = vmatprep.mubr.bf16.mxu0 0
    %613 = vmatmul.mubr.bf16.gmra.mxu0 %v472
    %v614 = vpop.f32.mrf.mxu0
    %v615 = vadd.f32 0.0, %v614
    %v616 = vpop.f32.mrf.mxu0
    %v617 = vpop.f32.mrf.mxu0
    %v618 = vadd.f32 0.0, %v617
    %v619 = vpop.f32.mrf.mxu0
    %620 = vmatprep.mubr.bf16.mxu0 0
    %621 = vmatmul.mubr.bf16.gmra.mxu0 %v473
    %v622 = vpop.f32.mrf.mxu0
    %v623 = vadd.f32 0.0, %v622
    %v624 = vpop.f32.mrf.mxu0
    %v625 = vpop.f32.mrf.mxu0
    %v626 = vadd.f32 0.0, %v625
    %v627 = vpop.f32.mrf.mxu0
    %628 = vdwg.mxu0
    %v645 = vunpack.c.l.b16 %v500
    %v646 = vunpack.c.l.b16 %v501
    %v647 = vunpack.c.l.b16 %v502
    %v648 = vunpack.c.l.b16 %v503
    %v649 = vunpack.c.l.b16 %v504
    %v650 = vunpack.c.l.b16 %v505
    %v651 = vunpack.c.l.b16 %v506
    %v652 = vunpack.c.l.b16 %v507
    %v653 = vunpack.c.l.b16 %v508
    %v654 = vunpack.c.l.b16 %v509
    %v655 = vunpack.c.l.b16 %v510
    %v656 = vunpack.c.l.b16 %v511
    %v657 = vunpack.c.l.b16 %v512
    %v658 = vunpack.c.l.b16 %v513
    %v659 = vunpack.c.l.b16 %v514
    %v660 = vunpack.c.l.b16 %v515
    %v661 = vpack.c.b16 %v646, %v645
    %v662 = vpack.c.b16 %v648, %v647
    %v663 = vpack.c.b16 %v650, %v649
    %v664 = vpack.c.b16 %v652, %v651
    %v665 = vpack.c.b16 %v654, %v653
    %v666 = vpack.c.b16 %v656, %v655
    %v667 = vpack.c.b16 %v658, %v657
    %v668 = vpack.c.b16 %v660, %v659
    %677 = vmatprep.subr.bf16.mxu0 0
    %678 = vmatpush1.bf16.msra.mxu0 %v668
    %679 = vmatprep.subr.bf16.mxu0 0
    %680 = vmatpush1.bf16.msra.mxu0 %v667
    %681 = vmatprep.subr.bf16.mxu0 0
    %682 = vmatpush1.bf16.msra.mxu0 %v666
    %683 = vmatprep.subr.bf16.mxu0 0
    %684 = vmatpush1.bf16.msra.mxu0 %v665
    %685 = vmatprep.subr.bf16.mxu0 0
    %686 = vmatpush1.bf16.msra.mxu0 %v664
    %687 = vmatprep.subr.bf16.mxu0 0
    %688 = vmatpush1.bf16.msra.mxu0 %v663
    %689 = vmatprep.subr.bf16.mxu0 0
    %690 = vmatpush1.bf16.msra.mxu0 %v662
    %691 = vmatprep.subr.bf16.mxu0 0
    %692 = vmatpush1.bf16.msra.mxu0 %v661
    %693 = vmatprep.subr.bf16.mxu0 0
    %694 = vmatpush2.bf16.msra.mxu0 0
    %695 = vmatprep.subr.bf16.mxu0 0
    %696 = vmatpush2.bf16.msra.mxu0 0
    %697 = vmatprep.subr.bf16.mxu0 0
    %698 = vmatpush2.bf16.msra.mxu0 0
    %699 = vmatprep.subr.bf16.mxu0 0
    %700 = vmatpush2.bf16.msra.mxu0 0
    %701 = vmatprep.subr.bf16.mxu0 0
    %702 = vmatpush2.bf16.msra.mxu0 0
    %703 = vmatprep.subr.bf16.mxu0 0
    %704 = vmatpush2.bf16.msra.mxu0 0
    %705 = vmatprep.subr.bf16.mxu0 0
    %706 = vmatpush2.bf16.msra.mxu0 0
    %707 = vmatprep.subr.bf16.mxu0 0
    %708 = vmatpush2.bf16.msra.mxu0 0
    %709 = vmatprep.mubr.bf16.mxu0 0
    %710 = vmatmul.mubr.bf16.gmra.mxu0 %v490
    %v711 = vpop.f32.mrf.mxu0
    %v712 = vadd.f32 %v615, %v711
    %v713 = vpop.f32.mrf.mxu0
    %v714 = vpop.f32.mrf.mxu0
    %v715 = vadd.f32 %v618, %v714
    %v716 = vpop.f32.mrf.mxu0
    %717 = vmatprep.mubr.bf16.mxu0 0
    %718 = vmatmul.mubr.bf16.gmra.mxu0 %v491
    %v719 = vpop.f32.mrf.mxu0
    %v720 = vadd.f32 %v623, %v719
    %v721 = vpop.f32.mrf.mxu0
    %v722 = vpop.f32.mrf.mxu0
    %v723 = vadd.f32 %v626, %v722
    %v724 = vpop.f32.mrf.mxu0
    %725 = vdwg.mxu0
    %v726 = vld [vmem:[#allocation7 + $0x80] sm:$0xf]
    %v727 = vld [vmem:[#allocation7 + $0x84] sm:$0xf]
    %v728 = vld [vmem:[#allocation7 + $0x88] sm:$0xf]
    %v729 = vld [vmem:[#allocation7 + $0x8c] sm:$0xf]
    %v730 = vld [vmem:[#allocation7 + $0x90] sm:$0xf]
    %v731 = vld [vmem:[#allocation7 + $0x94] sm:$0xf]
    %v732 = vld [vmem:[#allocation7 + $0x98] sm:$0xf]
    %v733 = vld [vmem:[#allocation7 + $0x9c] sm:$0xf]
    %v734 = vld [vmem:[#allocation7 + $0xa0] sm:$0xf]
    %v735 = vld [vmem:[#allocation7 + $0xa4] sm:$0xf]
    %v736 = vld [vmem:[#allocation7 + $0xa8] sm:$0xf]
    %v737 = vld [vmem:[#allocation7 + $0xac] sm:$0xf]
    %v738 = vld [vmem:[#allocation7 + $0xb0] sm:$0xf]
    %v739 = vld [vmem:[#allocation7 + $0xb4] sm:$0xf]
    %v740 = vld [vmem:[#allocation7 + $0xb8] sm:$0xf]
    %v741 = vld [vmem:[#allocation7 + $0xbc] sm:$0xf]
    %v758 = vunpack.c.l.b16 %v726
    %v759 = vunpack.c.l.b16 %v727
    %v760 = vunpack.c.l.b16 %v728
    %v761 = vunpack.c.l.b16 %v729
    %v762 = vunpack.c.l.b16 %v730
    %v763 = vunpack.c.l.b16 %v731
    %v764 = vunpack.c.l.b16 %v732
    %v765 = vunpack.c.l.b16 %v733
    %v766 = vunpack.c.l.b16 %v734
    %v767 = vunpack.c.l.b16 %v735
    %v768 = vunpack.c.l.b16 %v736
    %v769 = vunpack.c.l.b16 %v737
    %v770 = vunpack.c.l.b16 %v738
    %v771 = vunpack.c.l.b16 %v739
    %v772 = vunpack.c.l.b16 %v740
    %v773 = vunpack.c.l.b16 %v741
    %v774 = vpack.c.b16 %v759, %v758
    %v775 = vpack.c.b16 %v761, %v760
    %v776 = vpack.c.b16 %v763, %v762
    %v777 = vpack.c.b16 %v765, %v764
    %v778 = vpack.c.b16 %v767, %v766
    %v779 = vpack.c.b16 %v769, %v768
    %v780 = vpack.c.b16 %v771, %v770
    %v781 = vpack.c.b16 %v773, %v772
    %790 = vmatprep.subr.bf16.mxu0 0
    %791 = vmatpush1.bf16.msra.mxu0 %v781
    %792 = vmatprep.subr.bf16.mxu0 0
    %793 = vmatpush1.bf16.msra.mxu0 %v780
    %794 = vmatprep.subr.bf16.mxu0 0
    %795 = vmatpush1.bf16.msra.mxu0 %v779
    %796 = vmatprep.subr.bf16.mxu0 0
    %797 = vmatpush1.bf16.msra.mxu0 %v778
    %798 = vmatprep.subr.bf16.mxu0 0
    %799 = vmatpush1.bf16.msra.mxu0 %v777
    %800 = vmatprep.subr.bf16.mxu0 0
    %801 = vmatpush1.bf16.msra.mxu0 %v776
    %802 = vmatprep.subr.bf16.mxu0 0
    %803 = vmatpush1.bf16.msra.mxu0 %v775
    %804 = vmatprep.subr.bf16.mxu0 0
    %805 = vmatpush1.bf16.msra.mxu0 %v774
    %806 = vmatprep.subr.bf16.mxu0 0
    %807 = vmatpush2.bf16.msra.mxu0 0
    %808 = vmatprep.subr.bf16.mxu0 0
    %809 = vmatpush2.bf16.msra.mxu0 0
    %810 = vmatprep.subr.bf16.mxu0 0
    %811 = vmatpush2.bf16.msra.mxu0 0
    %812 = vmatprep.subr.bf16.mxu0 0
    %813 = vmatpush2.bf16.msra.mxu0 0
    %814 = vmatprep.subr.bf16.mxu0 0
    %815 = vmatpush2.bf16.msra.mxu0 0
    %816 = vmatprep.subr.bf16.mxu0 0
    %817 = vmatpush2.bf16.msra.mxu0 0
    %818 = vmatprep.subr.bf16.mxu0 0
    %819 = vmatpush2.bf16.msra.mxu0 0
    %820 = vmatprep.subr.bf16.mxu0 0
    %821 = vmatpush2.bf16.msra.mxu0 0
    %822 = vmatprep.mubr.bf16.mxu0 0
    %823 = vmatmul.mubr.bf16.gmra.mxu0 %v498
    %v824 = vpop.f32.mrf.mxu0
    %v825 = vadd.f32 0.0, %v824
    %v826 = vpop.f32.mrf.mxu0
    %v827 = vpop.f32.mrf.mxu0
    %v828 = vadd.f32 0.0, %v827
    %v829 = vpop.f32.mrf.mxu0
    %830 = vmatprep.mubr.bf16.mxu0 0
    %831 = vmatmul.mubr.bf16.gmra.mxu0 %v499
    %v832 = vpop.f32.mrf.mxu0
    %v833 = vadd.f32 0.0, %v832
    %v834 = vpop.f32.mrf.mxu0
    %v835 = vpop.f32.mrf.mxu0
    %v836 = vadd.f32 0.0, %v835
    %v837 = vpop.f32.mrf.mxu0
    %838 = vdwg.mxu0
    %v839 = vadd.f32 %v712, %v825
    %v840 = vadd.f32 %v715, %v828
    %v841 = vadd.f32 %v720, %v833
    %v842 = vadd.f32 %v723, %v836
    %v843 = vld [vmem:[%s7] sm:$0x1]
    %v844 = vld [vmem:[%s8] sm:$0x1]
    %v845 = vadd.f32 %v839, %v840
    %v846 = vadd.f32 %v845, %v841
    %v847 = vadd.f32 %v846, %v842
    %v848 = vrot.slane %v847, 4
    %v849 = vadd.f32 %v847, %v848
    %v850 = vrot.slane %v849, 2
    %v851 = vadd.f32 %v849, %v850
    %v852 = vrot.slane %v851, 1
    %v853 = vadd.f32 %v851, %v852
    %854 = vrot.lane.b32.xlu0 %v853, 8
    %v855 = vpop.permute.xlu0 %854
    %v856 = vadd.f32 %v853, %v855
    %857 = vrot.lane.b32.xlu0 %v856, 16
    %v858 = vpop.permute.xlu0 %857
    %v859 = vadd.f32 %v856, %v858
    %860 = vrot.lane.b32.xlu0 %v859, 32
    %v861 = vpop.permute.xlu0 %860
    %v862 = vadd.f32 %v859, %v861
    %863 = vrot.lane.b32.xlu0 %v862, 64
    %v864 = vpop.permute.xlu0 %863
    %v865 = vadd.f32 %v862, %v864
    %v866 = vmul.f32 %v865, 0.001953125
    %v867 = vlaneseq
    %v868 = vshrl.u32 %v867, 7
    %v869 = vsub.s32 0, %v868
    %v870 = vrot.slane %v866, %v869
    %v871 = vsub.f32 %v839, %v870
    %v872 = vsub.f32 %v840, %v870
    %v873 = vsub.f32 %v841, %v870
    %v874 = vsub.f32 %v842, %v870
    %v875 = vmul.f32 %v871, %v871
    %v876 = vmul.f32 %v872, %v872
    %v877 = vmul.f32 %v873, %v873
    %v878 = vmul.f32 %v874, %v874
    %v879 = vadd.f32 %v875, %v876
    %v880 = vadd.f32 %v879, %v877
    %v881 = vadd.f32 %v880, %v878
    %v882 = vrot.slane %v881, 4
    %v883 = vadd.f32 %v881, %v882
    %v884 = vrot.slane %v883, 2
    %v885 = vadd.f32 %v883, %v884
    %v886 = vrot.slane %v885, 1
    %v887 = vadd.f32 %v885, %v886
    %888 = vrot.lane.b32.xlu0 %v887, 8
    %v889 = vpop.permute.xlu0 %888
    %v890 = vadd.f32 %v887, %v889
    %891 = vrot.lane.b32.xlu0 %v890, 16
    %v892 = vpop.permute.xlu0 %891
    %v893 = vadd.f32 %v890, %v892
    %894 = vrot.lane.b32.xlu0 %v893, 32
    %v895 = vpop.permute.xlu0 %894
    %v896 = vadd.f32 %v893, %v895
    %897 = vrot.lane.b32.xlu0 %v896, 64
    %v898 = vpop.permute.xlu0 %897
    %v899 = vadd.f32 %v896, %v898
    %v900 = vmul.f32 %v899, 0.001953125
    %v901 = vadd.f32 %v900, 1e-05
    %v902 = vrsqrt.pop %v901
    %v903 = vmul.f32 %v843, %v902
    %v904 = vmul.f32 %v866, %v903
    %v905 = vsub.f32 %v844, %v904
    %v907 = vlaneseq
    %v908 = vshrl.u32 %v907, 7
    %v909 = vsub.s32 0, %v908
    %v910 = vrot.slane %v903, %v909
    %v912 = vmul.f32 %v839, %v910
    %v913 = vmul.f32 %v840, %v910
    %v914 = vmul.f32 %v841, %v910
    %v915 = vmul.f32 %v842, %v910
    %v917 = vlaneseq
    %v918 = vshrl.u32 %v917, 7
    %v919 = vsub.s32 0, %v918
    %v920 = vrot.slane %v905, %v919
    %v922 = vadd.f32 %v912, %v920
    %v923 = vadd.f32 %v913, %v920
    %v924 = vadd.f32 %v914, %v920
    %v925 = vadd.f32 %v915, %v920
    %v926 = vmax.f32 %v922, 0.0
    %v927 = vmax.f32 %v923, 0.0
    %v928 = vmax.f32 %v924, 0.0
    %v929 = vmax.f32 %v925, 0.0
    %930 = vst [vmem:[#allocation8] sm:$0xff] %v926
    %931 = vst [vmem:[#allocation8 + $0x8] sm:$0xff] %v927
    %932 = vst [vmem:[#allocation8 + $0x10] sm:$0xff] %v928
    %933 = vst [vmem:[#allocation8 + $0x18] sm:$0xff] %v929
    // Predicated region
    $region50: #{tpu_custom_call.1} parent=1 // pred_check
      _
    $region51: #{tpu_custom_call.1} parent=1 // pred_check_branch
      %935 = sbr.rel (0) target = $region53
    $region52: #{tpu_custom_call.1} parent=1 // pred_region
      %s937 = ssub.s32 512, 512
      %938 = vsyncadd [#allocation4], %s937
      %s939 = sshll.u32 [#allocation8], 4
      %s940 = int_to_ptr.vmem [resolvable:$true] %s939
      %945 = dma.vmem_to_hbm [thread:$0]  %s940, 512, %s9, [#allocation4], 128, 128, 8
    $region53: #{tpu_custom_call.1} parent=1 // pred_fallthru
      _
    // Predicated region
    $region54: #{tpu_custom_call.1} parent=1 // pred_check
      _
    $region55: #{tpu_custom_call.1} parent=1 // pred_check_branch
      %947 = sbr.rel (0) target = $region57
    $region56: #{tpu_custom_call.1} parent=1 // pred_region
      %948 = dma.done [#allocation4], 512
    $region57: #{tpu_custom_call.1} parent=1 // pred_fallthru
      _
    %949 = vsyncpa [#allocation3], 1
    %950 = vsyncpa [#allocation6], 1
    %951 = vsyncpa [#allocation4], 1

</llo_original>
